<compile_context>
chip_gen: v7x
topology: tpu7x:2x2x1
jax: 0.10.0
libtpu: 0.0.40
codegen_flags: <defaults>
</compile_context>

<pallas_src>
import functools
import math

import jax
import jax.numpy as jnp
from jax.experimental import pallas as pl
from jax.experimental.pallas import tpu as pltpu


_INV_SQRT2 = 1.0 / math.sqrt(2.0)
_MAX_LANES_PER_STEP = 2048   # taps buffer ~ 2 * 9*CP*4 B/lane (~0.6 KiB/lane) stays small


def _exact_gelu(x):
    # PyTorch nn.GELU() default: exact erf formulation.
    return 0.5 * x * (1.0 + jax.lax.erf(x * _INV_SQRT2))


def _num_tensorcores_per_chip():
    """Best-effort TensorCore count visible to one Pallas grid (v7x / v4-megacore = 2)."""
    try:
        kind = jax.devices()[0].device_kind.lower()
    except Exception:
        return 1
    return 2 if ("v7" in kind or "v4" in kind) else 1


def _rcb_kernel(W, C, mask_ref, x_ref, wa_ref, b1_ref, wb_ref, b2_ref, out_ref):
    """One lane-batched slab per grid step.

    x_ref   : (1, CP, L)   input slab; rows 0..C-1 = x channels, rows C..CP-1 = 0.
                           L = images_per_step * H * W, images contiguous along lanes.
    mask_ref: (8, CP, L)   f32 validity mask per non-center tap (pre-broadcast over
                           sublanes, tiled per image) — zeroes halo / roll-wrap taps.
    wa_ref  : (CP, 9*CP)   fused weights: rows 0..C-1 = conv2 weights acting on x,
                           rows C..2C-1 = conv1 weights.  Column k = tap*CP + cin_slot.
    b1_ref  : (CP, 1)      conv1 bias in rows C..2C-1, zeros elsewhere.
    wb_ref  : (CP, 9*CP)   conv2 weights acting on x1, placed at cin_slot = C..2C-1.
    b2_ref  : (CP, 1)      conv2 bias in rows 0..C-1.
    out_ref : (1, C, L)
    """
    L = x_ref.shape[2]
    xv = x_ref[0].astype(jnp.float32)                 # (CP, L), rows >= C are zero

    def im2col(t):
        # 9 shifted taps, each an 8-sublane-aligned (CP, L) piece -> (9*CP, L).
        pieces = []
        j = 0
        for oy in (-1, 0, 1):
            for ox in (-1, 0, 1):
                if oy == 0 and ox == 0:
                    pieces.append(t)
                    continue
                s = oy * W + ox                       # source pixel = p + s
                rolled = pltpu.roll(t, shift=(-s) % L, axis=1)
                pieces.append(rolled * mask_ref[j])   # zero halo / cross-image wrap
                j += 1
        return jnp.concatenate(pieces, axis=0)

    taps_x = im2col(xv)                                                    # (9*CP, L)

    # Fused MXU matmul over the shared taps(x):
    #   rows 0..C-1  -> conv2 contribution from x (w2a)
    #   rows C..2C-1 -> conv1 pre-activation (w1)
    z = jnp.dot(wa_ref[...], taps_x, preferred_element_type=jnp.float32)   # (CP, L)

    # Exact-erf GELU.  Rows other than C..2C-1 are don't-care values: their weight
    # columns in wb are zero, so they can never contribute to the second matmul.
    x1p = _exact_gelu(z + b1_ref[...])                                     # rows C..2C-1 = x1

    taps_x1 = im2col(x1p)                                                  # (9*CP, L)
    y = z + jnp.dot(wb_ref[...], taps_x1, preferred_element_type=jnp.float32) + b2_ref[...]

    # rows 0..C-1 of y = conv2(concat([x, x1])); add residual and store lane-dense.
    out_ref[0] = (y[:C] + xv[:C]).astype(out_ref.dtype)


@jax.jit
def residual_conv_block(x_nchw, w1, b1, w2, b2):
    """x_nchw: (B, C, H, W); w1: (C, C, 3, 3); w2: (C, 2C, 3, 3); b1, b2: (C,)."""
    B, C, H, W = x_nchw.shape
    HW = H * W
    CP = -(-2 * C // 8) * 8                     # round_up(2C, 8): tile-aligned channel slots

    # --- pick grid: fold batch onto lanes, keep every TensorCore busy -------------------
    n_tc = _num_tensorcores_per_chip()
    ipg = B if n_tc <= 1 else max(1, B // n_tc)              # images folded per grid step
    ipg = min(ipg, max(1, _MAX_LANES_PER_STEP // HW))        # cap taps/VMEM per step
    if B % ipg != 0:
        ipg = 1   # TODO(synk): masked tail step for ragged batches instead of un-folding.
    G = B // ipg
    L = ipg * HW                                             # lanes per grid step

    # --- activations: channel-pad to CP, fold ipg images onto lanes ---------------------
    xp = jnp.pad(x_nchw.reshape(B, C, HW), ((0, 0), (0, CP - C), (0, 0)))   # (B, CP, HW)
    x_slab = jnp.swapaxes(xp.reshape(G, ipg, CP, HW), 1, 2).reshape(G, CP, L)

    # --- weights: im2col layout, column k = tap*CP + cin_slot ---------------------------
    w1_t = jnp.transpose(w1, (0, 2, 3, 1)).reshape(C, 9, C)       # (cout, tap, cin)
    w2_t = jnp.transpose(w2, (0, 2, 3, 1))                        # (C, 3, 3, 2C)
    w2a_t = w2_t[..., :C].reshape(C, 9, C)                        # acts on x
    w2b_t = w2_t[..., C:].reshape(C, 9, C)                        # acts on x1

    wa = jnp.zeros((CP, 9, CP), jnp.float32)
    wa = wa.at[:C, :, :C].set(w2a_t)          # rows 0..C-1 : conv2 weights on x
    wa = wa.at[C:2 * C, :, :C].set(w1_t)      # rows C..2C-1: conv1 weights
    wa = wa.reshape(CP, 9 * CP)

    wb = jnp.zeros((CP, 9, CP), jnp.float32)
    wb = wb.at[:C, :, C:2 * C].set(w2b_t)     # x1 lives in sublane slots C..2C-1
    wb = wb.reshape(CP, 9 * CP)

    b1p = jnp.zeros((CP, 1), jnp.float32).at[C:2 * C, 0].set(b1.astype(jnp.float32))
    b2p = jnp.zeros((CP, 1), jnp.float32).at[:C, 0].set(b2.astype(jnp.float32))

    # --- precomputed boundary masks (8 non-center taps), tiled per image ----------------
    pix = jnp.arange(HW, dtype=jnp.int32)
    hh, ww = pix // W, pix % W
    rows = []
    for oy in (-1, 0, 1):
        for ox in (-1, 0, 1):
            if oy == 0 and ox == 0:
                continue
            valid = (((hh + oy) >= 0) & ((hh + oy) < H) &
                     ((ww + ox) >= 0) & ((ww + ox) < W))
            rows.append(valid.astype(jnp.float32))
    mask_hw = jnp.stack(rows, axis=0)                                  # (8, HW)
    mask = jnp.tile(mask_hw, (1, ipg))                                 # (8, L) per-image
    mask = jnp.broadcast_to(mask[:, None, :], (8, CP, L))              # replicate sublanes

    kernel = functools.partial(_rcb_kernel, W, C)

    # TODO(synk): for large H*W add a spatial row-block grid axis with a 1-row halo in the
    # index_map; the per-step taps buffer grows ~0.6 KiB per lane, which exhausts v7x's
    # 64 MiB VMEM roughly 2x earlier than v5e/v6e's 128 MiB.
    out_slab = pl.pallas_call(
        kernel,
        out_shape=jax.ShapeDtypeStruct((G, C, L), x_nchw.dtype),
        grid=(G,),
        in_specs=[
            pl.BlockSpec((8, CP, L), lambda g: (0, 0, 0)),     # tap masks (constant)
            pl.BlockSpec((1, CP, L), lambda g: (g, 0, 0)),     # x slab
            pl.BlockSpec((CP, 9 * CP), lambda g: (0, 0)),      # fused [w2a ; w1]
            pl.BlockSpec((CP, 1), lambda g: (0, 0)),           # b1 (padded)
            pl.BlockSpec((CP, 9 * CP), lambda g: (0, 0)),      # w2b (x1 slots)
            pl.BlockSpec((CP, 1), lambda g: (0, 0)),           # b2 (padded)
        ],
        out_specs=pl.BlockSpec((1, C, L), lambda g: (g, 0, 0)),
        compiler_params=pltpu.CompilerParams(
            dimension_semantics=("parallel",),                 # shards steps across TCs
            vmem_limit_bytes=32 * 1024 * 1024),
    )(mask, x_slab, wa, b1p, wb, b2p)

    # (G, C, ipg*HW) -> (B, C, H, W)
    out = jnp.swapaxes(out_slab.reshape(G, C, ipg, HW), 1, 2).reshape(B, C, H, W)
    return out


def _reference(x_nchw, w1, b1, w2, b2):
    """Pure-JAX reference using lax.conv_general_dilated (NCHW, like PyTorch)."""
    conv = functools.partial(
        jax.lax.conv_general_dilated,
        window_strides=(1, 1), padding=((1, 1), (1, 1)),
        dimension_numbers=('NCHW', 'OIHW', 'NCHW'))
    x1 = _exact_gelu(conv(x_nchw, w1) + b1[None, :, None, None])
    x2 = conv(jnp.concatenate([x_nchw, x1], axis=1), w2) + b2[None, :, None, None]
    return x2 + x_nchw


if __name__ == "__main__":
    B, C, H, W = 2, 4, 16, 16
    key = jax.random.PRNGKey(0)
    kx, k1, k2, k3, k4 = jax.random.split(key, 5)

    x = jax.random.normal(kx, (B, C, H, W), jnp.float32)

    # Deterministic PyTorch-style (kaiming-uniform-ish) parameter init.
    fan1 = C * 3 * 3
    fan2 = 2 * C * 3 * 3
    w1 = jax.random.uniform(k1, (C, C, 3, 3), jnp.float32,
                            -1.0 / math.sqrt(fan1), 1.0 / math.sqrt(fan1))
    b1 = jax.random.uniform(k2, (C,), jnp.float32,
                            -1.0 / math.sqrt(fan1), 1.0 / math.sqrt(fan1))
    w2 = jax.random.uniform(k3, (C, 2 * C, 3, 3), jnp.float32,
                            -1.0 / math.sqrt(fan2), 1.0 / math.sqrt(fan2))
    b2 = jax.random.uniform(k4, (C,), jnp.float32,
                            -1.0 / math.sqrt(fan2), 1.0 / math.sqrt(fan2))

    out = residual_conv_block(x, w1, b1, w2, b2)
    out = jax.block_until_ready(out)

    ref = _reference(x, w1, b1, w2, b2)
    assert out.shape == (B, C, H, W)
    assert jnp.allclose(out, ref, rtol=1e-4, atol=1e-4), "mismatch vs reference"

    print("KERNEL_OK")
</pallas_src>

<mosaic_0001>
module attributes {stable_mosaic.version = 11 : i64} {
  func.func @_rcb_kernel(%arg0: i32, %arg1: memref<8x8x512xf32, #tpu.memory_space<vmem>>, %arg2: memref<1x8x512xf32, #tpu.memory_space<vmem>>, %arg3: memref<8x72xf32, #tpu.memory_space<vmem>>, %arg4: memref<8x1xf32, #tpu.memory_space<vmem>>, %arg5: memref<8x72xf32, #tpu.memory_space<vmem>>, %arg6: memref<8x1xf32, #tpu.memory_space<vmem>>, %arg7: memref<1x4x512xf32, #tpu.memory_space<vmem>>) attributes {dimension_semantics = [#tpu.dimension_semantics<parallel>], iteration_bounds = array<i64: 1>, scalar_prefetch = 0 : i64, scratch_operands = 0 : i64, tpu.core_type = #tpu.core_type<tc>, window_params = [{pipeline_mode = #tpu.pipeline_mode<synchronous>, transform_indices = @transform_0, window_bounds = array<i64: 8, 8, 512>}, {transform_indices = @transform_1, window_bounds = array<i64: 1, 8, 512>}, {pipeline_mode = #tpu.pipeline_mode<synchronous>, transform_indices = @transform_2, window_bounds = array<i64: 8, 72>}, {pipeline_mode = #tpu.pipeline_mode<synchronous>, transform_indices = @transform_3, window_bounds = array<i64: 8, 1>}, {pipeline_mode = #tpu.pipeline_mode<synchronous>, transform_indices = @transform_4, window_bounds = array<i64: 8, 72>}, {pipeline_mode = #tpu.pipeline_mode<synchronous>, transform_indices = @transform_5, window_bounds = array<i64: 8, 1>}, {transform_indices = @transform_6, window_bounds = array<i64: 1, 4, 512>}]} {
    %c0 = arith.constant 0 : index
    %c0_0 = arith.constant 0 : index
    %c0_1 = arith.constant 0 : index
    %0 = vector.load %arg2[%c0, %c0_0, %c0_1] : memref<1x8x512xf32, #tpu.memory_space<vmem>>, vector<1x8x512xf32>
    %1 = vector.shape_cast %0 : vector<1x8x512xf32> to vector<8x512xf32>
    %c17_i32 = arith.constant 17 : i32
    %2 = tpu.dynamic_rotate %1 by %c17_i32 dim 1 : vector<8x512xf32>, i32 -> vector<8x512xf32>
    %c0_2 = arith.constant 0 : index
    %c0_3 = arith.constant 0 : index
    %c0_4 = arith.constant 0 : index
    %3 = vector.load %arg1[%c0_2, %c0_3, %c0_4] : memref<8x8x512xf32, #tpu.memory_space<vmem>>, vector<1x8x512xf32>
    %4 = vector.shape_cast %3 : vector<1x8x512xf32> to vector<8x512xf32>
    %5 = arith.mulf %2, %4 : vector<8x512xf32>
    %c16_i32 = arith.constant 16 : i32
    %6 = tpu.dynamic_rotate %1 by %c16_i32 dim 1 : vector<8x512xf32>, i32 -> vector<8x512xf32>
    %c1 = arith.constant 1 : index
    %c0_5 = arith.constant 0 : index
    %c0_6 = arith.constant 0 : index
    %7 = vector.load %arg1[%c1, %c0_5, %c0_6] : memref<8x8x512xf32, #tpu.memory_space<vmem>>, vector<1x8x512xf32>
    %8 = vector.shape_cast %7 : vector<1x8x512xf32> to vector<8x512xf32>
    %9 = arith.mulf %6, %8 : vector<8x512xf32>
    %c15_i32 = arith.constant 15 : i32
    %10 = tpu.dynamic_rotate %1 by %c15_i32 dim 1 : vector<8x512xf32>, i32 -> vector<8x512xf32>
    %c2 = arith.constant 2 : index
    %c0_7 = arith.constant 0 : index
    %c0_8 = arith.constant 0 : index
    %11 = vector.load %arg1[%c2, %c0_7, %c0_8] : memref<8x8x512xf32, #tpu.memory_space<vmem>>, vector<1x8x512xf32>
    %12 = vector.shape_cast %11 : vector<1x8x512xf32> to vector<8x512xf32>
    %13 = arith.mulf %10, %12 : vector<8x512xf32>
    %c1_i32 = arith.constant 1 : i32
    %14 = tpu.dynamic_rotate %1 by %c1_i32 dim 1 : vector<8x512xf32>, i32 -> vector<8x512xf32>
    %c3 = arith.constant 3 : index
    %c0_9 = arith.constant 0 : index
    %c0_10 = arith.constant 0 : index
    %15 = vector.load %arg1[%c3, %c0_9, %c0_10] : memref<8x8x512xf32, #tpu.memory_space<vmem>>, vector<1x8x512xf32>
    %16 = vector.shape_cast %15 : vector<1x8x512xf32> to vector<8x512xf32>
    %17 = arith.mulf %14, %16 : vector<8x512xf32>
    %c511_i32 = arith.constant 511 : i32
    %18 = tpu.dynamic_rotate %1 by %c511_i32 dim 1 : vector<8x512xf32>, i32 -> vector<8x512xf32>
    %c4 = arith.constant 4 : index
    %c0_11 = arith.constant 0 : index
    %c0_12 = arith.constant 0 : index
    %19 = vector.load %arg1[%c4, %c0_11, %c0_12] : memref<8x8x512xf32, #tpu.memory_space<vmem>>, vector<1x8x512xf32>
    %20 = vector.shape_cast %19 : vector<1x8x512xf32> to vector<8x512xf32>
    %21 = arith.mulf %18, %20 : vector<8x512xf32>
    %c497_i32 = arith.constant 497 : i32
    %22 = tpu.dynamic_rotate %1 by %c497_i32 dim 1 : vector<8x512xf32>, i32 -> vector<8x512xf32>
    %c5 = arith.constant 5 : index
    %c0_13 = arith.constant 0 : index
    %c0_14 = arith.constant 0 : index
    %23 = vector.load %arg1[%c5, %c0_13, %c0_14] : memref<8x8x512xf32, #tpu.memory_space<vmem>>, vector<1x8x512xf32>
    %24 = vector.shape_cast %23 : vector<1x8x512xf32> to vector<8x512xf32>
    %25 = arith.mulf %22, %24 : vector<8x512xf32>
    %c496_i32 = arith.constant 496 : i32
    %26 = tpu.dynamic_rotate %1 by %c496_i32 dim 1 : vector<8x512xf32>, i32 -> vector<8x512xf32>
    %c6 = arith.constant 6 : index
    %c0_15 = arith.constant 0 : index
    %c0_16 = arith.constant 0 : index
    %27 = vector.load %arg1[%c6, %c0_15, %c0_16] : memref<8x8x512xf32, #tpu.memory_space<vmem>>, vector<1x8x512xf32>
    %28 = vector.shape_cast %27 : vector<1x8x512xf32> to vector<8x512xf32>
    %29 = arith.mulf %26, %28 : vector<8x512xf32>
    %c495_i32 = arith.constant 495 : i32
    %30 = tpu.dynamic_rotate %1 by %c495_i32 dim 1 : vector<8x512xf32>, i32 -> vector<8x512xf32>
    %c7 = arith.constant 7 : index
    %c0_17 = arith.constant 0 : index
    %c0_18 = arith.constant 0 : index
    %31 = vector.load %arg1[%c7, %c0_17, %c0_18] : memref<8x8x512xf32, #tpu.memory_space<vmem>>, vector<1x8x512xf32>
    %32 = vector.shape_cast %31 : vector<1x8x512xf32> to vector<8x512xf32>
    %33 = arith.mulf %30, %32 : vector<8x512xf32>
    %34 = tpu.concatenate %5, %9, %13, %17, %1, %21, %25, %29, %33 in 0 : vector<8x512xf32>, vector<8x512xf32>, vector<8x512xf32>, vector<8x512xf32>, vector<8x512xf32>, vector<8x512xf32>, vector<8x512xf32>, vector<8x512xf32>, vector<8x512xf32> -> vector<72x512xf32>
    %c0_19 = arith.constant 0 : index
    %c0_20 = arith.constant 0 : index
    %35 = vector.load %arg3[%c0_19, %c0_20] : memref<8x72xf32, #tpu.memory_space<vmem>>, vector<8x72xf32>
    %cst = arith.constant dense<0.000000e+00> : vector<8x512xf32>
    %36 = tpu.matmul %35, %34, %cst {dimension_numbers = #tpu.dot_dimension_numbers<[1], [0], [0], [1], [0, 0, 1, 1], [], []>} : vector<8x72xf32>, vector<72x512xf32>, vector<8x512xf32> -> vector<8x512xf32>
    %c0_21 = arith.constant 0 : index
    %c0_22 = arith.constant 0 : index
    %37 = vector.load %arg4[%c0_21, %c0_22] : memref<8x1xf32, #tpu.memory_space<vmem>>, vector<8x1xf32>
    %38 = vector.broadcast %37 : vector<8x1xf32> to vector<8x512xf32>
    %39 = arith.addf %36, %38 : vector<8x512xf32>
    %cst_23 = arith.constant 5.000000e-01 : f32
    %40 = vector.broadcast %cst_23 : f32 to vector<8x512xf32>
    %41 = arith.mulf %40, %39 : vector<8x512xf32>
    %cst_24 = arith.constant 0.707106769 : f32
    %42 = vector.broadcast %cst_24 : f32 to vector<8x512xf32>
    %43 = arith.mulf %39, %42 : vector<8x512xf32>
    %44 = math.erf %43 : vector<8x512xf32>
    %cst_25 = arith.constant 1.000000e+00 : f32
    %45 = vector.broadcast %cst_25 : f32 to vector<8x512xf32>
    %46 = arith.addf %45, %44 : vector<8x512xf32>
    %47 = arith.mulf %41, %46 : vector<8x512xf32>
    %c17_i32_26 = arith.constant 17 : i32
    %48 = tpu.dynamic_rotate %47 by %c17_i32_26 dim 1 : vector<8x512xf32>, i32 -> vector<8x512xf32>
    %c0_27 = arith.constant 0 : index
    %c0_28 = arith.constant 0 : index
    %c0_29 = arith.constant 0 : index
    %49 = vector.load %arg1[%c0_27, %c0_28, %c0_29] : memref<8x8x512xf32, #tpu.memory_space<vmem>>, vector<1x8x512xf32>
    %50 = vector.shape_cast %49 : vector<1x8x512xf32> to vector<8x512xf32>
    %51 = arith.mulf %48, %50 : vector<8x512xf32>
    %c16_i32_30 = arith.constant 16 : i32
    %52 = tpu.dynamic_rotate %47 by %c16_i32_30 dim 1 : vector<8x512xf32>, i32 -> vector<8x512xf32>
    %c1_31 = arith.constant 1 : index
    %c0_32 = arith.constant 0 : index
    %c0_33 = arith.constant 0 : index
    %53 = vector.load %arg1[%c1_31, %c0_32, %c0_33] : memref<8x8x512xf32, #tpu.memory_space<vmem>>, vector<1x8x512xf32>
    %54 = vector.shape_cast %53 : vector<1x8x512xf32> to vector<8x512xf32>
    %55 = arith.mulf %52, %54 : vector<8x512xf32>
    %c15_i32_34 = arith.constant 15 : i32
    %56 = tpu.dynamic_rotate %47 by %c15_i32_34 dim 1 : vector<8x512xf32>, i32 -> vector<8x512xf32>
    %c2_35 = arith.constant 2 : index
    %c0_36 = arith.constant 0 : index
    %c0_37 = arith.constant 0 : index
    %57 = vector.load %arg1[%c2_35, %c0_36, %c0_37] : memref<8x8x512xf32, #tpu.memory_space<vmem>>, vector<1x8x512xf32>
    %58 = vector.shape_cast %57 : vector<1x8x512xf32> to vector<8x512xf32>
    %59 = arith.mulf %56, %58 : vector<8x512xf32>
    %c1_i32_38 = arith.constant 1 : i32
    %60 = tpu.dynamic_rotate %47 by %c1_i32_38 dim 1 : vector<8x512xf32>, i32 -> vector<8x512xf32>
    %c3_39 = arith.constant 3 : index
    %c0_40 = arith.constant 0 : index
    %c0_41 = arith.constant 0 : index
    %61 = vector.load %arg1[%c3_39, %c0_40, %c0_41] : memref<8x8x512xf32, #tpu.memory_space<vmem>>, vector<1x8x512xf32>
    %62 = vector.shape_cast %61 : vector<1x8x512xf32> to vector<8x512xf32>
    %63 = arith.mulf %60, %62 : vector<8x512xf32>
    %c511_i32_42 = arith.constant 511 : i32
    %64 = tpu.dynamic_rotate %47 by %c511_i32_42 dim 1 : vector<8x512xf32>, i32 -> vector<8x512xf32>
    %c4_43 = arith.constant 4 : index
    %c0_44 = arith.constant 0 : index
    %c0_45 = arith.constant 0 : index
    %65 = vector.load %arg1[%c4_43, %c0_44, %c0_45] : memref<8x8x512xf32, #tpu.memory_space<vmem>>, vector<1x8x512xf32>
    %66 = vector.shape_cast %65 : vector<1x8x512xf32> to vector<8x512xf32>
    %67 = arith.mulf %64, %66 : vector<8x512xf32>
    %c497_i32_46 = arith.constant 497 : i32
    %68 = tpu.dynamic_rotate %47 by %c497_i32_46 dim 1 : vector<8x512xf32>, i32 -> vector<8x512xf32>
    %c5_47 = arith.constant 5 : index
    %c0_48 = arith.constant 0 : index
    %c0_49 = arith.constant 0 : index
    %69 = vector.load %arg1[%c5_47, %c0_48, %c0_49] : memref<8x8x512xf32, #tpu.memory_space<vmem>>, vector<1x8x512xf32>
    %70 = vector.shape_cast %69 : vector<1x8x512xf32> to vector<8x512xf32>
    %71 = arith.mulf %68, %70 : vector<8x512xf32>
    %c496_i32_50 = arith.constant 496 : i32
    %72 = tpu.dynamic_rotate %47 by %c496_i32_50 dim 1 : vector<8x512xf32>, i32 -> vector<8x512xf32>
    %c6_51 = arith.constant 6 : index
    %c0_52 = arith.constant 0 : index
    %c0_53 = arith.constant 0 : index
    %73 = vector.load %arg1[%c6_51, %c0_52, %c0_53] : memref<8x8x512xf32, #tpu.memory_space<vmem>>, vector<1x8x512xf32>
    %74 = vector.shape_cast %73 : vector<1x8x512xf32> to vector<8x512xf32>
    %75 = arith.mulf %72, %74 : vector<8x512xf32>
    %c495_i32_54 = arith.constant 495 : i32
    %76 = tpu.dynamic_rotate %47 by %c495_i32_54 dim 1 : vector<8x512xf32>, i32 -> vector<8x512xf32>
    %c7_55 = arith.constant 7 : index
    %c0_56 = arith.constant 0 : index
    %c0_57 = arith.constant 0 : index
    %77 = vector.load %arg1[%c7_55, %c0_56, %c0_57] : memref<8x8x512xf32, #tpu.memory_space<vmem>>, vector<1x8x512xf32>
    %78 = vector.shape_cast %77 : vector<1x8x512xf32> to vector<8x512xf32>
    %79 = arith.mulf %76, %78 : vector<8x512xf32>
    %80 = tpu.concatenate %51, %55, %59, %63, %47, %67, %71, %75, %79 in 0 : vector<8x512xf32>, vector<8x512xf32>, vector<8x512xf32>, vector<8x512xf32>, vector<8x512xf32>, vector<8x512xf32>, vector<8x512xf32>, vector<8x512xf32>, vector<8x512xf32> -> vector<72x512xf32>
    %c0_58 = arith.constant 0 : index
    %c0_59 = arith.constant 0 : index
    %81 = vector.load %arg5[%c0_58, %c0_59] : memref<8x72xf32, #tpu.memory_space<vmem>>, vector<8x72xf32>
    %cst_60 = arith.constant dense<0.000000e+00> : vector<8x512xf32>
    %82 = tpu.matmul %81, %80, %cst_60 {dimension_numbers = #tpu.dot_dimension_numbers<[1], [0], [0], [1], [0, 0, 1, 1], [], []>} : vector<8x72xf32>, vector<72x512xf32>, vector<8x512xf32> -> vector<8x512xf32>
    %83 = arith.addf %36, %82 : vector<8x512xf32>
    %c0_61 = arith.constant 0 : index
    %c0_62 = arith.constant 0 : index
    %84 = vector.load %arg6[%c0_61, %c0_62] : memref<8x1xf32, #tpu.memory_space<vmem>>, vector<8x1xf32>
    %85 = vector.broadcast %84 : vector<8x1xf32> to vector<8x512xf32>
    %86 = arith.addf %83, %85 : vector<8x512xf32>
    %87 = vector.extract_strided_slice %86 {offsets = [0, 0], sizes = [4, 512], strides = [1, 1]} : vector<8x512xf32> to vector<4x512xf32>
    %88 = vector.extract_strided_slice %1 {offsets = [0, 0], sizes = [4, 512], strides = [1, 1]} : vector<8x512xf32> to vector<4x512xf32>
    %89 = arith.addf %87, %88 : vector<4x512xf32>
    %c0_63 = arith.constant 0 : index
    %c0_64 = arith.constant 0 : index
    %c0_65 = arith.constant 0 : index
    %90 = vector.load %arg7[%c0_63, %c0_64, %c0_65] : memref<1x4x512xf32, #tpu.memory_space<vmem>>, vector<1x4x512xf32>
    %91 = vector.shape_cast %90 : vector<1x4x512xf32> to vector<4x512xf32>
    %92 = vector.shape_cast %89 : vector<4x512xf32> to vector<1x4x512xf32>
    tpu.vector_store %arg7[%c0_63, %c0_64, %c0_65], %92 {strides = array<i32>} : memref<1x4x512xf32, #tpu.memory_space<vmem>>, vector<1x4x512xf32>,
    return
  }
  func.func @transform_0(%arg0: i32) -> (i32, i32, i32) {
    %c0_i32 = arith.constant 0 : i32
    %c0_i32_0 = arith.constant 0 : i32
    %c0_i32_1 = arith.constant 0 : i32
    %c0_i32_2 = arith.constant 0 : i32
    return %c0_i32, %c0_i32_0, %c0_i32_1 : i32, i32, i32
  }
  func.func @transform_1(%arg0: i32) -> (i32, i32, i32) {
    %c0_i32 = arith.constant 0 : i32
    %c0_i32_0 = arith.constant 0 : i32
    %c0_i32_1 = arith.constant 0 : i32
    return %arg0, %c0_i32, %c0_i32_0 : i32, i32, i32
  }
  func.func @transform_2(%arg0: i32) -> (i32, i32) {
    %c0_i32 = arith.constant 0 : i32
    %c0_i32_0 = arith.constant 0 : i32
    %c0_i32_1 = arith.constant 0 : i32
    return %c0_i32, %c0_i32_0 : i32, i32
  }
  func.func @transform_3(%arg0: i32) -> (i32, i32) {
    %c0_i32 = arith.constant 0 : i32
    %c0_i32_0 = arith.constant 0 : i32
    %c0_i32_1 = arith.constant 0 : i32
    return %c0_i32, %c0_i32_0 : i32, i32
  }
  func.func @transform_4(%arg0: i32) -> (i32, i32) {
    %c0_i32 = arith.constant 0 : i32
    %c0_i32_0 = arith.constant 0 : i32
    %c0_i32_1 = arith.constant 0 : i32
    return %c0_i32, %c0_i32_0 : i32, i32
  }
  func.func @transform_5(%arg0: i32) -> (i32, i32) {
    %c0_i32 = arith.constant 0 : i32
    %c0_i32_0 = arith.constant 0 : i32
    %c0_i32_1 = arith.constant 0 : i32
    return %c0_i32, %c0_i32_0 : i32, i32
  }
  func.func @transform_6(%arg0: i32) -> (i32, i32, i32) {
    %c0_i32 = arith.constant 0 : i32
    %c0_i32_0 = arith.constant 0 : i32
    %c0_i32_1 = arith.constant 0 : i32
    return %arg0, %c0_i32, %c0_i32_0 : i32, i32, i32
  }
}

</mosaic_0001>

<llo_original>
// kernel: residual_conv_block.1
$region0: #{residual_conv_block.1}
  #allocation0 [shape = 'u32[]', space=smem, size = 0x4, offset = 0x4, fixed_abs, tag = 'smem constant byte address 0x4 - core index']
  #allocation1 [shape = 'u32[144,128]{1,0:T(1,128)}', space=vmem, size = 0x12000, scoped, tag = 'internal scratch']
  %s0 = inlined_call_operand.vmem [shape: f32[8,8,512], index: 0, kind: input, shape index: {}]
  %s1 = inlined_call_operand.vmem [shape: f32[1,8,512], index: 1, kind: input, shape index: {}]
  %s2 = inlined_call_operand.vmem [shape: f32[8,72], index: 2, kind: input, shape index: {}]
  %s3 = inlined_call_operand.vmem [shape: f32[8,1], index: 3, kind: input, shape index: {}]
  %s4 = inlined_call_operand.vmem [shape: f32[8,72], index: 4, kind: input, shape index: {}]
  %s5 = inlined_call_operand.vmem [shape: f32[8,1], index: 5, kind: input, shape index: {}]
  %s6 = inlined_call_operand.vmem [shape: f32[1,4,512], index: 6, kind: output, shape index: {}]
  %s7 = sld [smem:[#allocation0]]
  $region34: #{residual_conv_block.1} parent=0
    _
  %s9 = ssub.s32 1, %s7
  %s10 = scalar_select 0, %s9, %s7
  // Predicated region
  $region2: #{residual_conv_block.1} parent=0 // pred_check
    _
  $region3: #{residual_conv_block.1} parent=0 // pred_check_branch
    %12 = sbr.rel (0) target = $region5
  $region4: #{residual_conv_block.1} parent=0 // pred_region
    _
  $region5: #{residual_conv_block.1} parent=0 // pred_fallthru
    _
  // Predicated region
  $region6: #{residual_conv_block.1} parent=0 // pred_check
    _
  $region7: #{residual_conv_block.1} parent=0 // pred_check_branch
    %14 = sbr.rel (0) target = $region9
  $region8: #{residual_conv_block.1} parent=0 // pred_region
    _
  $region9: #{residual_conv_block.1} parent=0 // pred_fallthru
    _
  // Predicated region
  $region10: #{residual_conv_block.1} parent=0 // pred_check
    _
  $region11: #{residual_conv_block.1} parent=0 // pred_check_branch
    %16 = sbr.rel (0) target = $region13
  $region12: #{residual_conv_block.1} parent=0 // pred_region
    _
  $region13: #{residual_conv_block.1} parent=0 // pred_fallthru
    _
  // Predicated region
  $region14: #{residual_conv_block.1} parent=0 // pred_check
    _
  $region15: #{residual_conv_block.1} parent=0 // pred_check_branch
    %18 = sbr.rel (0) target = $region17
  $region16: #{residual_conv_block.1} parent=0 // pred_region
    _
  $region17: #{residual_conv_block.1} parent=0 // pred_fallthru
    _
  // Predicated region
  $region18: #{residual_conv_block.1} parent=0 // pred_check
    _
  $region19: #{residual_conv_block.1} parent=0 // pred_check_branch
    %20 = sbr.rel (0) target = $region21
  $region20: #{residual_conv_block.1} parent=0 // pred_region
    _
  $region21: #{residual_conv_block.1} parent=0 // pred_fallthru
    _
  // Predicated region
  $region22: #{residual_conv_block.1} parent=0 // pred_check
    _
  $region23: #{residual_conv_block.1} parent=0 // pred_check_branch
    %22 = sbr.rel (0) target = $region25
  $region24: #{residual_conv_block.1} parent=0 // pred_region
    _
  $region25: #{residual_conv_block.1} parent=0 // pred_fallthru
    _
  %v23 = vld [vmem:[%s1] sm:$0xff]
  %v24 = vld [vmem:[%s1 + $0x8] sm:$0xff]
  %v25 = vld [vmem:[%s1 + $0x10] sm:$0xff]
  %v26 = vld [vmem:[%s1 + $0x18] sm:$0xff]
  %27 = vrot.lane.b32.xlu0 %v23, 17
  %v28 = vpop.permute.xlu0 %27
  %29 = vrot.lane.b32.xlu0 %v24, 17
  %v30 = vpop.permute.xlu0 %29
  %31 = vrot.lane.b32.xlu0 %v25, 17
  %v32 = vpop.permute.xlu0 %31
  %33 = vrot.lane.b32.xlu0 %v26, 17
  %v34 = vpop.permute.xlu0 %33
  %v35 = vlaneseq
  %v36 = vand.u32 %v35, 127
  %vm37 = vcmp.lt.s32.totalorder %v36, 17
  %v38 = vsel %vm37, %v32, %v34
  %v39 = vsel %vm37, %v30, %v32
  %v40 = vsel %vm37, %v28, %v30
  %v41 = vsel %vm37, %v34, %v28
  %v42 = vld [vmem:[%s0] sm:$0xff]
  %v43 = vld [vmem:[%s0 + $0x8] sm:$0xff]
  %v44 = vld [vmem:[%s0 + $0x10] sm:$0xff]
  %v45 = vld [vmem:[%s0 + $0x18] sm:$0xff]
  %v46 = vmul.f32 %v41, %v42
  %v47 = vmul.f32 %v40, %v43
  %v48 = vmul.f32 %v39, %v44
  %v49 = vmul.f32 %v38, %v45
  %50 = vrot.lane.b32.xlu0 %v23, 16
  %v51 = vpop.permute.xlu0 %50
  %52 = vrot.lane.b32.xlu0 %v24, 16
  %v53 = vpop.permute.xlu0 %52
  %54 = vrot.lane.b32.xlu0 %v25, 16
  %v55 = vpop.permute.xlu0 %54
  %56 = vrot.lane.b32.xlu0 %v26, 16
  %v57 = vpop.permute.xlu0 %56
  %vm58 = vcmp.lt.s32.totalorder %v36, 16
  %v59 = vsel %vm58, %v55, %v57
  %v60 = vsel %vm58, %v53, %v55
  %v61 = vsel %vm58, %v51, %v53
  %v62 = vsel %vm58, %v57, %v51
  %s63 = scalar_lea.vmem %s0, 32
  %v64 = vld [vmem:[%s63] sm:$0xff]
  %v65 = vld [vmem:[%s63 + $0x8] sm:$0xff]
  %v66 = vld [vmem:[%s63 + $0x10] sm:$0xff]
  %v67 = vld [vmem:[%s63 + $0x18] sm:$0xff]
  %v68 = vmul.f32 %v62, %v64
  %v69 = vmul.f32 %v61, %v65
  %v70 = vmul.f32 %v60, %v66
  %v71 = vmul.f32 %v59, %v67
  %72 = vrot.lane.b32.xlu0 %v23, 15
  %v73 = vpop.permute.xlu0 %72
  %74 = vrot.lane.b32.xlu0 %v24, 15
  %v75 = vpop.permute.xlu0 %74
  %76 = vrot.lane.b32.xlu0 %v25, 15
  %v77 = vpop.permute.xlu0 %76
  %78 = vrot.lane.b32.xlu0 %v26, 15
  %v79 = vpop.permute.xlu0 %78
  %vm80 = vcmp.lt.s32.totalorder %v36, 15
  %v81 = vsel %vm80, %v77, %v79
  %v82 = vsel %vm80, %v75, %v77
  %v83 = vsel %vm80, %v73, %v75
  %v84 = vsel %vm80, %v79, %v73
  %s85 = scalar_lea.vmem %s0, 64
  %v86 = vld [vmem:[%s85] sm:$0xff]
  %v87 = vld [vmem:[%s85 + $0x8] sm:$0xff]
  %v88 = vld [vmem:[%s85 + $0x10] sm:$0xff]
  %v89 = vld [vmem:[%s85 + $0x18] sm:$0xff]
  %v90 = vmul.f32 %v84, %v86
  %v91 = vmul.f32 %v83, %v87
  %v92 = vmul.f32 %v82, %v88
  %v93 = vmul.f32 %v81, %v89
  %94 = vrot.lane.b32.xlu0 %v23, 1
  %v95 = vpop.permute.xlu0 %94
  %96 = vrot.lane.b32.xlu0 %v24, 1
  %v97 = vpop.permute.xlu0 %96
  %98 = vrot.lane.b32.xlu0 %v25, 1
  %v99 = vpop.permute.xlu0 %98
  %100 = vrot.lane.b32.xlu0 %v26, 1
  %v101 = vpop.permute.xlu0 %100
  %vm102 = vcmp.lt.s32.totalorder %v36, 1
  %v103 = vsel %vm102, %v99, %v101
  %v104 = vsel %vm102, %v97, %v99
  %v105 = vsel %vm102, %v95, %v97
  %v106 = vsel %vm102, %v101, %v95
  %s107 = scalar_lea.vmem %s0, 96
  %v108 = vld [vmem:[%s107] sm:$0xff]
  %v109 = vld [vmem:[%s107 + $0x8] sm:$0xff]
  %v110 = vld [vmem:[%s107 + $0x10] sm:$0xff]
  %v111 = vld [vmem:[%s107 + $0x18] sm:$0xff]
  %v112 = vmul.f32 %v106, %v108
  %v113 = vmul.f32 %v105, %v109
  %v114 = vmul.f32 %v104, %v110
  %v115 = vmul.f32 %v103, %v111
  %116 = vrot.lane.b32.xlu0 %v23, 127
  %v117 = vpop.permute.xlu0 %116
  %118 = vrot.lane.b32.xlu0 %v24, 127
  %v119 = vpop.permute.xlu0 %118
  %120 = vrot.lane.b32.xlu0 %v25, 127
  %v121 = vpop.permute.xlu0 %120
  %122 = vrot.lane.b32.xlu0 %v26, 127
  %v123 = vpop.permute.xlu0 %122
  %vm124 = vcmp.lt.s32.totalorder %v36, 127
  %v125 = vsel %vm124, %v121, %v123
  %v126 = vsel %vm124, %v119, %v121
  %v127 = vsel %vm124, %v117, %v119
  %v128 = vsel %vm124, %v123, %v117
  %s129 = scalar_lea.vmem %s0, 128
  %v130 = vld [vmem:[%s129] sm:$0xff]
  %v131 = vld [vmem:[%s129 + $0x8] sm:$0xff]
  %v132 = vld [vmem:[%s129 + $0x10] sm:$0xff]
  %v133 = vld [vmem:[%s129 + $0x18] sm:$0xff]
  %v134 = vmul.f32 %v127, %v130
  %v135 = vmul.f32 %v126, %v131
  %v136 = vmul.f32 %v125, %v132
  %v137 = vmul.f32 %v128, %v133
  %138 = vrot.lane.b32.xlu0 %v23, 113
  %v139 = vpop.permute.xlu0 %138
  %140 = vrot.lane.b32.xlu0 %v24, 113
  %v141 = vpop.permute.xlu0 %140
  %142 = vrot.lane.b32.xlu0 %v25, 113
  %v143 = vpop.permute.xlu0 %142
  %144 = vrot.lane.b32.xlu0 %v26, 113
  %v145 = vpop.permute.xlu0 %144
  %vm146 = vcmp.lt.s32.totalorder %v36, 113
  %v147 = vsel %vm146, %v143, %v145
  %v148 = vsel %vm146, %v141, %v143
  %v149 = vsel %vm146, %v139, %v141
  %v150 = vsel %vm146, %v145, %v139
  %s151 = scalar_lea.vmem %s0, 160
  %v152 = vld [vmem:[%s151] sm:$0xff]
  %v153 = vld [vmem:[%s151 + $0x8] sm:$0xff]
  %v154 = vld [vmem:[%s151 + $0x10] sm:$0xff]
  %v155 = vld [vmem:[%s151 + $0x18] sm:$0xff]
  %v156 = vmul.f32 %v149, %v152
  %v157 = vmul.f32 %v148, %v153
  %v158 = vmul.f32 %v147, %v154
  %v159 = vmul.f32 %v150, %v155
  %160 = vrot.lane.b32.xlu0 %v23, 112
  %v161 = vpop.permute.xlu0 %160
  %162 = vrot.lane.b32.xlu0 %v24, 112
  %v163 = vpop.permute.xlu0 %162
  %164 = vrot.lane.b32.xlu0 %v25, 112
  %v165 = vpop.permute.xlu0 %164
  %166 = vrot.lane.b32.xlu0 %v26, 112
  %v167 = vpop.permute.xlu0 %166
  %vm168 = vcmp.lt.s32.totalorder %v36, 112
  %v169 = vsel %vm168, %v165, %v167
  %v170 = vsel %vm168, %v163, %v165
  %v171 = vsel %vm168, %v161, %v163
  %v172 = vsel %vm168, %v167, %v161
  %s173 = scalar_lea.vmem %s0, 192
  %v174 = vld [vmem:[%s173] sm:$0xff]
  %v175 = vld [vmem:[%s173 + $0x8] sm:$0xff]
  %v176 = vld [vmem:[%s173 + $0x10] sm:$0xff]
  %v177 = vld [vmem:[%s173 + $0x18] sm:$0xff]
  %v178 = vmul.f32 %v171, %v174
  %v179 = vmul.f32 %v170, %v175
  %v180 = vmul.f32 %v169, %v176
  %v181 = vmul.f32 %v172, %v177
  %182 = vrot.lane.b32.xlu0 %v23, 111
  %v183 = vpop.permute.xlu0 %182
  %184 = vrot.lane.b32.xlu0 %v24, 111
  %v185 = vpop.permute.xlu0 %184
  %186 = vrot.lane.b32.xlu0 %v25, 111
  %v187 = vpop.permute.xlu0 %186
  %188 = vrot.lane.b32.xlu0 %v26, 111
  %v189 = vpop.permute.xlu0 %188
  %vm190 = vcmp.lt.s32.totalorder %v36, 111
  %v191 = vsel %vm190, %v187, %v189
  %v192 = vsel %vm190, %v185, %v187
  %v193 = vsel %vm190, %v183, %v185
  %v194 = vsel %vm190, %v189, %v183
  %s195 = scalar_lea.vmem %s0, 224
  %v196 = vld [vmem:[%s195] sm:$0xff]
  %v197 = vld [vmem:[%s195 + $0x8] sm:$0xff]
  %v198 = vld [vmem:[%s195 + $0x10] sm:$0xff]
  %v199 = vld [vmem:[%s195 + $0x18] sm:$0xff]
  %v200 = vmul.f32 %v193, %v196
  %v201 = vmul.f32 %v192, %v197
  %v202 = vmul.f32 %v191, %v198
  %v203 = vmul.f32 %v194, %v199
  %v204 = vld [vmem:[%s2] sm:$0xff]
  %vm205 = vcmask 588800
  %v207 = vsel %vm205, %v204, 0
  %209 = vmatprep.subr.mxu0 %v47
  %210 = vmatpush1.msra.mxu0 %v46
  %211 = vmatprep.subr.mxu0 %v69
  %212 = vmatpush1.msra.mxu0 %v68
  %213 = vmatprep.subr.mxu0 %v91
  %214 = vmatpush1.msra.mxu0 %v90
  %215 = vmatprep.subr.mxu0 %v113
  %216 = vmatpush1.msra.mxu0 %v112
  %217 = vmatprep.subr.mxu0 %v24
  %218 = vmatpush1.msra.mxu0 %v23
  %219 = vmatprep.subr.mxu0 %v135
  %220 = vmatpush1.msra.mxu0 %v134
  %221 = vmatprep.subr.mxu0 %v157
  %222 = vmatpush1.msra.mxu0 %v156
  %223 = vmatprep.subr.mxu0 %v179
  %224 = vmatpush1.msra.mxu0 %v178
  %225 = vmatprep.subr.mxu0 %v201
  %226 = vmatpush1.msra.mxu0 %v200
  %227 = vmatprep.subr.mxu0 0.0
  %228 = vmatpush1.msra.mxu0 0.0
  %229 = vmatprep.subr.mxu0 0.0
  %230 = vmatpush1.msra.mxu0 0.0
  %231 = vmatprep.subr.mxu0 0.0
  %232 = vmatpush1.msra.mxu0 0.0
  %233 = vmatprep.subr.mxu0 0.0
  %234 = vmatpush1.msra.mxu0 0.0
  %235 = vmatprep.subr.mxu0 0.0
  %236 = vmatpush1.msra.mxu0 0.0
  %237 = vmatprep.subr.mxu0 0.0
  %238 = vmatpush1.msra.mxu0 0.0
  %239 = vmatprep.subr.mxu0 0.0
  %240 = vmatpush1.msra.mxu0 0.0
  %241 = vmatprep.subr.mxu0 0.0
  %242 = vmatpush1.msra.mxu0 0.0
  %243 = vmatprep.subr.mxu0 0.0
  %244 = vmatpush1.msra.mxu0 0.0
  %245 = vmatprep.subr.mxu0 0.0
  %246 = vmatpush1.msra.mxu0 0.0
  %247 = vmatprep.subr.mxu0 0.0
  %248 = vmatpush1.msra.mxu0 0.0
  %249 = vmatprep.subr.mxu0 0.0
  %250 = vmatpush1.msra.mxu0 0.0
  %251 = vmatprep.subr.mxu0 0.0
  %252 = vmatpush1.msra.mxu0 0.0
  %253 = vmatprep.subr.mxu0 0.0
  %254 = vmatpush1.msra.mxu0 0.0
  %255 = vmatprep.subr.mxu0 0.0
  %256 = vmatpush1.msra.mxu0 0.0
  %257 = vmatprep.subr.mxu0 0.0
  %258 = vmatpush1.msra.mxu0 0.0
  %259 = vmatprep.subr.mxu0 0.0
  %260 = vmatpush1.msra.mxu0 0.0
  %261 = vmatprep.subr.mxu0 0.0
  %262 = vmatpush1.msra.mxu0 0.0
  %263 = vmatprep.subr.mxu0 0.0
  %264 = vmatpush1.msra.mxu0 0.0
  %265 = vmatprep.subr.mxu0 0.0
  %266 = vmatpush1.msra.mxu0 0.0
  %267 = vmatprep.subr.mxu0 0.0
  %268 = vmatpush1.msra.mxu0 0.0
  %269 = vmatprep.subr.mxu0 0.0
  %270 = vmatpush1.msra.mxu0 0.0
  %271 = vmatprep.subr.mxu0 0.0
  %272 = vmatpush1.msra.mxu0 0.0
  %273 = vmatprep.mubr.f32.mxu0 0.0
  %274 = vmatmul.mubr.f32.gmra.mrb[0].mxu0 %v207
  %v275 = vpop.f32.mrb[0].mxu0
  %v276 = vadd.f32 0.0, %v275
  %v277 = vpop.f32.mrb[0].mxu0
  %v278 = vadd.f32 0.0, %v277
  %279 = vdwg.mxu0
  %280 = vmatprep.subr.mxu0 %v49
  %281 = vmatpush1.msra.mxu0 %v48
  %282 = vmatprep.subr.mxu0 %v71
  %283 = vmatpush1.msra.mxu0 %v70
  %284 = vmatprep.subr.mxu0 %v93
  %285 = vmatpush1.msra.mxu0 %v92
  %286 = vmatprep.subr.mxu0 %v115
  %287 = vmatpush1.msra.mxu0 %v114
  %288 = vmatprep.subr.mxu0 %v26
  %289 = vmatpush1.msra.mxu0 %v25
  %290 = vmatprep.subr.mxu0 %v137
  %291 = vmatpush1.msra.mxu0 %v136
  %292 = vmatprep.subr.mxu0 %v159
  %293 = vmatpush1.msra.mxu0 %v158
  %294 = vmatprep.subr.mxu0 %v181
  %295 = vmatpush1.msra.mxu0 %v180
  %296 = vmatprep.subr.mxu0 %v203
  %297 = vmatpush1.msra.mxu0 %v202
  %298 = vmatprep.subr.mxu0 0.0
  %299 = vmatpush1.msra.mxu0 0.0
  %300 = vmatprep.subr.mxu0 0.0
  %301 = vmatpush1.msra.mxu0 0.0
  %302 = vmatprep.subr.mxu0 0.0
  %303 = vmatpush1.msra.mxu0 0.0
  %304 = vmatprep.subr.mxu0 0.0
  %305 = vmatpush1.msra.mxu0 0.0
  %306 = vmatprep.subr.mxu0 0.0
  %307 = vmatpush1.msra.mxu0 0.0
  %308 = vmatprep.subr.mxu0 0.0
  %309 = vmatpush1.msra.mxu0 0.0
  %310 = vmatprep.subr.mxu0 0.0
  %311 = vmatpush1.msra.mxu0 0.0
  %312 = vmatprep.subr.mxu0 0.0
  %313 = vmatpush1.msra.mxu0 0.0
  %314 = vmatprep.subr.mxu0 0.0
  %315 = vmatpush1.msra.mxu0 0.0
  %316 = vmatprep.subr.mxu0 0.0
  %317 = vmatpush1.msra.mxu0 0.0
  %318 = vmatprep.subr.mxu0 0.0
  %319 = vmatpush1.msra.mxu0 0.0
  %320 = vmatprep.subr.mxu0 0.0
  %321 = vmatpush1.msra.mxu0 0.0
  %322 = vmatprep.subr.mxu0 0.0
  %323 = vmatpush1.msra.mxu0 0.0
  %324 = vmatprep.subr.mxu0 0.0
  %325 = vmatpush1.msra.mxu0 0.0
  %326 = vmatprep.subr.mxu0 0.0
  %327 = vmatpush1.msra.mxu0 0.0
  %328 = vmatprep.subr.mxu0 0.0
  %329 = vmatpush1.msra.mxu0 0.0
  %330 = vmatprep.subr.mxu0 0.0
  %331 = vmatpush1.msra.mxu0 0.0
  %332 = vmatprep.subr.mxu0 0.0
  %333 = vmatpush1.msra.mxu0 0.0
  %334 = vmatprep.subr.mxu0 0.0
  %335 = vmatpush1.msra.mxu0 0.0
  %336 = vmatprep.subr.mxu0 0.0
  %337 = vmatpush1.msra.mxu0 0.0
  %338 = vmatprep.subr.mxu0 0.0
  %339 = vmatpush1.msra.mxu0 0.0
  %340 = vmatprep.subr.mxu0 0.0
  %341 = vmatpush1.msra.mxu0 0.0
  %342 = vmatprep.subr.mxu0 0.0
  %343 = vmatpush1.msra.mxu0 0.0
  %344 = vmatprep.mubr.f32.mxu0 0.0
  %345 = vmatmul.mubr.f32.gmra.mrb[0].mxu0 %v207
  %v346 = vpop.f32.mrb[0].mxu0
  %v347 = vadd.f32 0.0, %v346
  %v348 = vpop.f32.mrb[0].mxu0
  %v349 = vadd.f32 0.0, %v348
  %350 = vdwg.mxu0
  %v351 = vld [vmem:[%s3] sm:$0xff]
  %353 = vset.pattern.permute.xlu0 0
  %354 = vperm.xlu0 %353, %v351
  %v355 = vpop.permute.xlu0 %354
  %v357 = vadd.f32 %v276, %v355
  %v358 = vadd.f32 %v278, %v355
  %v359 = vadd.f32 %v347, %v355
  %v360 = vadd.f32 %v349, %v355
  %v361 = vmul.f32 %v357, 0.5
  %v362 = vmul.f32 %v358, 0.5
  %v363 = vmul.f32 %v359, 0.5
  %v364 = vmul.f32 %v360, 0.5
  %v365 = vmul.f32 %v357, 0.70710677
  %v366 = vmul.f32 %v358, 0.70710677
  %v367 = vmul.f32 %v359, 0.70710677
  %v368 = vmul.f32 %v360, 0.70710677
  %v369 = verf.f32.pop %v365
  %v370 = verf.f32.pop %v366
  %v371 = verf.f32.pop %v367
  %v372 = verf.f32.pop %v368
  %v373 = vadd.f32 %v369, 1.0
  %v374 = vadd.f32 %v370, 1.0
  %v375 = vadd.f32 %v371, 1.0
  %v376 = vadd.f32 %v372, 1.0
  %v377 = vmul.f32 %v361, %v373
  %v378 = vmul.f32 %v362, %v374
  %v379 = vmul.f32 %v363, %v375
  %v380 = vmul.f32 %v364, %v376
  %381 = vrot.lane.b32.xlu0 %v377, 17
  %v382 = vpop.permute.xlu0 %381
  %383 = vrot.lane.b32.xlu0 %v378, 17
  %v384 = vpop.permute.xlu0 %383
  %385 = vrot.lane.b32.xlu0 %v379, 17
  %v386 = vpop.permute.xlu0 %385
  %387 = vrot.lane.b32.xlu0 %v380, 17
  %v388 = vpop.permute.xlu0 %387
  %v389 = vsel %vm37, %v386, %v388
  %v390 = vsel %vm37, %v384, %v386
  %v391 = vsel %vm37, %v382, %v384
  %v392 = vsel %vm37, %v388, %v382
  %v393 = vmul.f32 %v392, %v42
  %v394 = vmul.f32 %v391, %v43
  %v395 = vmul.f32 %v390, %v44
  %v396 = vmul.f32 %v389, %v45
  %397 = vrot.lane.b32.xlu0 %v377, 16
  %v398 = vpop.permute.xlu0 %397
  %399 = vrot.lane.b32.xlu0 %v378, 16
  %v400 = vpop.permute.xlu0 %399
  %401 = vrot.lane.b32.xlu0 %v379, 16
  %v402 = vpop.permute.xlu0 %401
  %403 = vrot.lane.b32.xlu0 %v380, 16
  %v404 = vpop.permute.xlu0 %403
  %v405 = vsel %vm58, %v402, %v404
  %v406 = vsel %vm58, %v400, %v402
  %v407 = vsel %vm58, %v398, %v400
  %v408 = vsel %vm58, %v404, %v398
  %v409 = vmul.f32 %v408, %v64
  %v410 = vmul.f32 %v407, %v65
  %v411 = vmul.f32 %v406, %v66
  %v412 = vmul.f32 %v405, %v67
  %413 = vrot.lane.b32.xlu0 %v377, 15
  %v414 = vpop.permute.xlu0 %413
  %415 = vrot.lane.b32.xlu0 %v378, 15
  %v416 = vpop.permute.xlu0 %415
  %417 = vrot.lane.b32.xlu0 %v379, 15
  %v418 = vpop.permute.xlu0 %417
  %419 = vrot.lane.b32.xlu0 %v380, 15
  %v420 = vpop.permute.xlu0 %419
  %v421 = vsel %vm80, %v418, %v420
  %v422 = vsel %vm80, %v416, %v418
  %v423 = vsel %vm80, %v414, %v416
  %v424 = vsel %vm80, %v420, %v414
  %v425 = vmul.f32 %v424, %v86
  %v426 = vmul.f32 %v423, %v87
  %v427 = vmul.f32 %v422, %v88
  %v428 = vmul.f32 %v421, %v89
  %429 = vrot.lane.b32.xlu0 %v377, 1
  %v430 = vpop.permute.xlu0 %429
  %431 = vrot.lane.b32.xlu0 %v378, 1
  %v432 = vpop.permute.xlu0 %431
  %433 = vrot.lane.b32.xlu0 %v379, 1
  %v434 = vpop.permute.xlu0 %433
  %435 = vrot.lane.b32.xlu0 %v380, 1
  %v436 = vpop.permute.xlu0 %435
  %v437 = vsel %vm102, %v434, %v436
  %v438 = vsel %vm102, %v432, %v434
  %v439 = vsel %vm102, %v430, %v432
  %v440 = vsel %vm102, %v436, %v430
  %v441 = vmul.f32 %v440, %v108
  %v442 = vmul.f32 %v439, %v109
  %v443 = vmul.f32 %v438, %v110
  %v444 = vmul.f32 %v437, %v111
  %445 = vrot.lane.b32.xlu0 %v377, 127
  %v446 = vpop.permute.xlu0 %445
  %447 = vrot.lane.b32.xlu0 %v378, 127
  %v448 = vpop.permute.xlu0 %447
  %449 = vrot.lane.b32.xlu0 %v379, 127
  %v450 = vpop.permute.xlu0 %449
  %451 = vrot.lane.b32.xlu0 %v380, 127
  %v452 = vpop.permute.xlu0 %451
  %v453 = vsel %vm124, %v450, %v452
  %v454 = vsel %vm124, %v448, %v450
  %v455 = vsel %vm124, %v446, %v448
  %v456 = vsel %vm124, %v452, %v446
  %v457 = vmul.f32 %v455, %v130
  %v458 = vmul.f32 %v454, %v131
  %v459 = vmul.f32 %v453, %v132
  %v460 = vmul.f32 %v456, %v133
  %461 = vrot.lane.b32.xlu0 %v377, 113
  %v462 = vpop.permute.xlu0 %461
  %463 = vrot.lane.b32.xlu0 %v378, 113
  %v464 = vpop.permute.xlu0 %463
  %465 = vrot.lane.b32.xlu0 %v379, 113
  %v466 = vpop.permute.xlu0 %465
  %467 = vrot.lane.b32.xlu0 %v380, 113
  %v468 = vpop.permute.xlu0 %467
  %v469 = vsel %vm146, %v466, %v468
  %v470 = vsel %vm146, %v464, %v466
  %v471 = vsel %vm146, %v462, %v464
  %v472 = vsel %vm146, %v468, %v462
  %v473 = vmul.f32 %v471, %v152
  %v474 = vmul.f32 %v470, %v153
  %v475 = vmul.f32 %v469, %v154
  %v476 = vmul.f32 %v472, %v155
  %477 = vrot.lane.b32.xlu0 %v377, 112
  %v478 = vpop.permute.xlu0 %477
  %479 = vrot.lane.b32.xlu0 %v378, 112
  %v480 = vpop.permute.xlu0 %479
  %481 = vrot.lane.b32.xlu0 %v379, 112
  %v482 = vpop.permute.xlu0 %481
  %483 = vrot.lane.b32.xlu0 %v380, 112
  %v484 = vpop.permute.xlu0 %483
  %v485 = vsel %vm168, %v482, %v484
  %v486 = vsel %vm168, %v480, %v482
  %v487 = vsel %vm168, %v478, %v480
  %v488 = vsel %vm168, %v484, %v478
  %v489 = vmul.f32 %v487, %v174
  %v490 = vmul.f32 %v486, %v175
  %v491 = vmul.f32 %v485, %v176
  %v492 = vmul.f32 %v488, %v177
  %493 = vrot.lane.b32.xlu0 %v377, 111
  %v494 = vpop.permute.xlu0 %493
  %495 = vrot.lane.b32.xlu0 %v378, 111
  %v496 = vpop.permute.xlu0 %495
  %497 = vrot.lane.b32.xlu0 %v379, 111
  %v498 = vpop.permute.xlu0 %497
  %499 = vrot.lane.b32.xlu0 %v380, 111
  %v500 = vpop.permute.xlu0 %499
  %v501 = vsel %vm190, %v498, %v500
  %v502 = vsel %vm190, %v496, %v498
  %v503 = vsel %vm190, %v494, %v496
  %v504 = vsel %vm190, %v500, %v494
  %v505 = vmul.f32 %v503, %v196
  %v506 = vmul.f32 %v502, %v197
  %v507 = vmul.f32 %v501, %v198
  %v508 = vmul.f32 %v504, %v199
  %v509 = vld [vmem:[%s4] sm:$0xff]
  %v511 = vsel %vm205, %v509, 0
  %513 = vmatprep.subr.mxu0 %v394
  %514 = vmatpush1.msra.mxu0 %v393
  %515 = vmatprep.subr.mxu0 %v410
  %516 = vmatpush1.msra.mxu0 %v409
  %517 = vmatprep.subr.mxu0 %v426
  %518 = vmatpush1.msra.mxu0 %v425
  %519 = vmatprep.subr.mxu0 %v442
  %520 = vmatpush1.msra.mxu0 %v441
  %521 = vmatprep.subr.mxu0 %v378
  %522 = vmatpush1.msra.mxu0 %v377
  %523 = vmatprep.subr.mxu0 %v458
  %524 = vmatpush1.msra.mxu0 %v457
  %525 = vmatprep.subr.mxu0 %v474
  %526 = vmatpush1.msra.mxu0 %v473
  %527 = vmatprep.subr.mxu0 %v490
  %528 = vmatpush1.msra.mxu0 %v489
  %529 = vmatprep.subr.mxu0 %v506
  %530 = vmatpush1.msra.mxu0 %v505
  %531 = vmatprep.subr.mxu0 0.0
  %532 = vmatpush1.msra.mxu0 0.0
  %533 = vmatprep.subr.mxu0 0.0
  %534 = vmatpush1.msra.mxu0 0.0
  %535 = vmatprep.subr.mxu0 0.0
  %536 = vmatpush1.msra.mxu0 0.0
  %537 = vmatprep.subr.mxu0 0.0
  %538 = vmatpush1.msra.mxu0 0.0
  %539 = vmatprep.subr.mxu0 0.0
  %540 = vmatpush1.msra.mxu0 0.0
  %541 = vmatprep.subr.mxu0 0.0
  %542 = vmatpush1.msra.mxu0 0.0
  %543 = vmatprep.subr.mxu0 0.0
  %544 = vmatpush1.msra.mxu0 0.0
  %545 = vmatprep.subr.mxu0 0.0
  %546 = vmatpush1.msra.mxu0 0.0
  %547 = vmatprep.subr.mxu0 0.0
  %548 = vmatpush1.msra.mxu0 0.0
  %549 = vmatprep.subr.mxu0 0.0
  %550 = vmatpush1.msra.mxu0 0.0
  %551 = vmatprep.subr.mxu0 0.0
  %552 = vmatpush1.msra.mxu0 0.0
  %553 = vmatprep.subr.mxu0 0.0
  %554 = vmatpush1.msra.mxu0 0.0
  %555 = vmatprep.subr.mxu0 0.0
  %556 = vmatpush1.msra.mxu0 0.0
  %557 = vmatprep.subr.mxu0 0.0
  %558 = vmatpush1.msra.mxu0 0.0
  %559 = vmatprep.subr.mxu0 0.0
  %560 = vmatpush1.msra.mxu0 0.0
  %561 = vmatprep.subr.mxu0 0.0
  %562 = vmatpush1.msra.mxu0 0.0
  %563 = vmatprep.subr.mxu0 0.0
  %564 = vmatpush1.msra.mxu0 0.0
  %565 = vmatprep.subr.mxu0 0.0
  %566 = vmatpush1.msra.mxu0 0.0
  %567 = vmatprep.subr.mxu0 0.0
  %568 = vmatpush1.msra.mxu0 0.0
  %569 = vmatprep.subr.mxu0 0.0
  %570 = vmatpush1.msra.mxu0 0.0
  %571 = vmatprep.subr.mxu0 0.0
  %572 = vmatpush1.msra.mxu0 0.0
  %573 = vmatprep.subr.mxu0 0.0
  %574 = vmatpush1.msra.mxu0 0.0
  %575 = vmatprep.subr.mxu0 0.0
  %576 = vmatpush1.msra.mxu0 0.0
  %577 = vmatprep.mubr.f32.mxu0 0.0
  %578 = vmatmul.mubr.f32.gmra.mrb[0].mxu0 %v511
  %v579 = vpop.f32.mrb[0].mxu0
  %v580 = vadd.f32 0.0, %v579
  %v581 = vpop.f32.mrb[0].mxu0
  %v582 = vadd.f32 0.0, %v581
  %583 = vdwg.mxu0
  %584 = vmatprep.subr.mxu0 %v396
  %585 = vmatpush1.msra.mxu0 %v395
  %586 = vmatprep.subr.mxu0 %v412
  %587 = vmatpush1.msra.mxu0 %v411
  %588 = vmatprep.subr.mxu0 %v428
  %589 = vmatpush1.msra.mxu0 %v427
  %590 = vmatprep.subr.mxu0 %v444
  %591 = vmatpush1.msra.mxu0 %v443
  %592 = vmatprep.subr.mxu0 %v380
  %593 = vmatpush1.msra.mxu0 %v379
  %594 = vmatprep.subr.mxu0 %v460
  %595 = vmatpush1.msra.mxu0 %v459
  %596 = vmatprep.subr.mxu0 %v476
  %597 = vmatpush1.msra.mxu0 %v475
  %598 = vmatprep.subr.mxu0 %v492
  %599 = vmatpush1.msra.mxu0 %v491
  %600 = vmatprep.subr.mxu0 %v508
  %601 = vmatpush1.msra.mxu0 %v507
  %602 = vmatprep.subr.mxu0 0.0
  %603 = vmatpush1.msra.mxu0 0.0
  %604 = vmatprep.subr.mxu0 0.0
  %605 = vmatpush1.msra.mxu0 0.0
  %606 = vmatprep.subr.mxu0 0.0
  %607 = vmatpush1.msra.mxu0 0.0
  %608 = vmatprep.subr.mxu0 0.0
  %609 = vmatpush1.msra.mxu0 0.0
  %610 = vmatprep.subr.mxu0 0.0
  %611 = vmatpush1.msra.mxu0 0.0
  %612 = vmatprep.subr.mxu0 0.0
  %613 = vmatpush1.msra.mxu0 0.0
  %614 = vmatprep.subr.mxu0 0.0
  %615 = vmatpush1.msra.mxu0 0.0
  %616 = vmatprep.subr.mxu0 0.0
  %617 = vmatpush1.msra.mxu0 0.0
  %618 = vmatprep.subr.mxu0 0.0
  %619 = vmatpush1.msra.mxu0 0.0
  %620 = vmatprep.subr.mxu0 0.0
  %621 = vmatpush1.msra.mxu0 0.0
  %622 = vmatprep.subr.mxu0 0.0
  %623 = vmatpush1.msra.mxu0 0.0
  %624 = vmatprep.subr.mxu0 0.0
  %625 = vmatpush1.msra.mxu0 0.0
  %626 = vmatprep.subr.mxu0 0.0
  %627 = vmatpush1.msra.mxu0 0.0
  %628 = vmatprep.subr.mxu0 0.0
  %629 = vmatpush1.msra.mxu0 0.0
  %630 = vmatprep.subr.mxu0 0.0
  %631 = vmatpush1.msra.mxu0 0.0
  %632 = vmatprep.subr.mxu0 0.0
  %633 = vmatpush1.msra.mxu0 0.0
  %634 = vmatprep.subr.mxu0 0.0
  %635 = vmatpush1.msra.mxu0 0.0
  %636 = vmatprep.subr.mxu0 0.0
  %637 = vmatpush1.msra.mxu0 0.0
  %638 = vmatprep.subr.mxu0 0.0
  %639 = vmatpush1.msra.mxu0 0.0
  %640 = vmatprep.subr.mxu0 0.0
  %641 = vmatpush1.msra.mxu0 0.0
  %642 = vmatprep.subr.mxu0 0.0
  %643 = vmatpush1.msra.mxu0 0.0
  %644 = vmatprep.subr.mxu0 0.0
  %645 = vmatpush1.msra.mxu0 0.0
  %646 = vmatprep.subr.mxu0 0.0
  %647 = vmatpush1.msra.mxu0 0.0
  %648 = vmatprep.mubr.f32.mxu0 0.0
  %649 = vmatmul.mubr.f32.gmra.mrb[0].mxu0 %v511
  %v650 = vpop.f32.mrb[0].mxu0
  %v651 = vadd.f32 0.0, %v650
  %v652 = vpop.f32.mrb[0].mxu0
  %v653 = vadd.f32 0.0, %v652
  %654 = vdwg.mxu0
  %v655 = vadd.f32 %v276, %v580
  %v656 = vadd.f32 %v278, %v582
  %v657 = vadd.f32 %v347, %v651
  %v658 = vadd.f32 %v349, %v653
  %v659 = vld [vmem:[%s5] sm:$0xff]
  %661 = vset.pattern.permute.xlu0 0
  %662 = vperm.xlu0 %661, %v659
  %v663 = vpop.permute.xlu0 %662
  %v665 = vadd.f32 %v655, %v663
  %v666 = vadd.f32 %v656, %v663
  %v667 = vadd.f32 %v657, %v663
  %v668 = vadd.f32 %v658, %v663
  %v669 = vadd.f32 %v665, %v23
  %v670 = vadd.f32 %v666, %v24
  %v671 = vadd.f32 %v667, %v25
  %v672 = vadd.f32 %v668, %v26
  %v677 = vcombine.low %v669, %v670
  %v678 = vcombine.low %v671, %v672
  %681 = vst [vmem:[%s6] sm:$0xff] %v677
  %682 = vst [vmem:[%s6 + $0x8] sm:$0xff] %v678
  // Predicated region
  $region26: #{residual_conv_block.1} parent=0 // pred_check
    _
  $region27: #{residual_conv_block.1} parent=0 // pred_check_branch
    %684 = sbr.rel (0) target = $region29
  $region28: #{residual_conv_block.1} parent=0 // pred_region
    _
  $region29: #{residual_conv_block.1} parent=0 // pred_fallthru
    _
  // Predicated region
  $region30: #{residual_conv_block.1} parent=0 // pred_check
    _
  $region31: #{residual_conv_block.1} parent=0 // pred_check_branch
    %686 = sbr.rel (0) target = $region33
  $region32: #{residual_conv_block.1} parent=0 // pred_region
    _
  $region33: #{residual_conv_block.1} parent=0 // pred_fallthru
    _

</llo_original>
